<compile_context>
chip_gen: v7x
topology: tpu7x:2x2x1
jax: 0.10.0
libtpu: 0.0.40
codegen_flags: <defaults>
</compile_context>

<pallas_src>
import functools

import jax
import jax.numpy as jnp
from jax.experimental import pallas as pl
from jax.experimental.pallas import tpu as pltpu


_LANE = 128
_SUBLANE = 16                    # covers f32 (8) and bf16 (16) sublane packing
_MIB = 1024 * 1024
_SMALL_PROBLEM_ELEMS = 1 << 18   # below this, let XLA fuse it for free


def _vmem_capacity_bytes():
    try:
        return int(pltpu.get_tpu_info().vmem_capacity_bytes)
    except Exception:
        return 64 * _MIB         # conservative default (v7x per-core size)


_VMEM_CAPACITY = _vmem_capacity_bytes()
# Tile-buffer budget: ~28 MiB on a 64 MiB part (v7x), ~92 MiB on 128 MiB parts.
_VMEM_TARGET = max(24 * _MIB, _VMEM_CAPACITY - 36 * _MIB)
# Scoped-VMEM ceiling: leave headroom for Mosaic internal scratch / semaphores.
_VMEM_LIMIT_CAP = _VMEM_CAPACITY - 8 * _MIB


def _round_up(x, n):
    return ((x + n - 1) // n) * n


def _cdiv(a, b):
    return (a + b - 1) // b


def _choose_row_tile(m, max_tm):
    """Balanced row tile so the last M tile is not nearly empty."""
    if m <= max_tm:
        return m                                   # single full-extent row tile
    n_tiles = _cdiv(m, max_tm)
    return min(max_tm, _round_up(_cdiv(m, n_tiles), _SUBLANE))


def _choose_col_tile(out_size, max_tn):
    """Column tile: full OUT if it fits, else a 256(or 128)-aligned tile."""
    if out_size <= max_tn:
        return out_size                            # single full-extent col tile
    align = 256 if max_tn >= 256 else _LANE        # feed the 2x256x256 MXU
    return max(_LANE, (max_tn // align) * align)


def _vmem_need_bytes(tm, tn, in_size, x_bytes, w_bytes, b_bytes, o_bytes):
    # Pallas double-buffers every BlockSpec-managed operand by default.
    return 2 * (tm * in_size * x_bytes       # x tile
                + in_size * tn * w_bytes     # weight tile
                + tn * b_bytes               # bias tile
                + tm * tn * o_bytes)         # output tile


def _linear_relu_kernel(x_ref, w_ref, b_ref, o_ref):
    # x: (tm, IN)  w: (IN, tn)  b: (1, tn)  o: (tm, tn)
    y = jnp.dot(x_ref[...], w_ref[...], preferred_element_type=jnp.float32)
    y = y + b_ref[...].astype(jnp.float32)              # f32 epilogue
    o_ref[...] = jnp.maximum(y, 0.0).astype(o_ref.dtype)  # single cast at store


@functools.partial(
    jax.jit,
    static_argnames=("max_tm", "max_tn", "allow_xla_fallback", "compute_dtype"))
def feature_extractor_forward(inputs, weight_t, bias, *, max_tm=512,
                              max_tn=2048, allow_xla_fallback=True,
                              compute_dtype=None):
    """relu(inputs @ weight_t + bias) over the last dim.

    inputs:   (*, IN)   any number of leading dims
    weight_t: (IN, OUT) (transpose of torch's nn.Linear weight)
    bias:     (OUT,)
    returns:  (*, OUT)
    """
    in_size, out_size = weight_t.shape
    if out_size == 0:
        # torch module's output_size == 0 branch returns a length-0 tensor.
        return jnp.zeros((0,), dtype=inputs.dtype)

    lead_shape = inputs.shape[:-1]
    m = 1
    for d in lead_shape:
        m *= d
    out_dtype = inputs.dtype

    # ---- small-problem fallback: XLA fuses this for free -------------------
    if allow_xla_fallback and m * in_size * out_size <= _SMALL_PROBLEM_ELEMS:
        y = jnp.dot(inputs, weight_t, preferred_element_type=jnp.float32)
        y = jnp.maximum(y + bias.astype(jnp.float32), 0.0)
        return y.astype(out_dtype).reshape(*lead_shape, out_size)

    x2d = inputs.reshape(m, in_size)
    if compute_dtype is not None:
        # Optional bf16 fast path: halves HBM bytes on both streamed operands;
        # accumulation stays f32 inside the kernel.
        x2d = x2d.astype(compute_dtype)
        weight_t = weight_t.astype(compute_dtype)
    bias2d = bias.reshape(1, out_size)

    x_bytes = x2d.dtype.itemsize
    w_bytes = weight_t.dtype.itemsize
    b_bytes = bias2d.dtype.itemsize
    o_bytes = jnp.dtype(out_dtype).itemsize

    # ---- tile selection under a generation-aware VMEM budget ----------------
    tm = _choose_row_tile(m, max_tm)
    tn = _choose_col_tile(out_size, max_tn)
    # Shrink tn first: shrinking tm multiplies weight re-fetches (grid_m grows)
    # while shrinking tn leaves total HBM traffic unchanged.
    while (_vmem_need_bytes(tm, tn, in_size, x_bytes, w_bytes, b_bytes, o_bytes)
           > _VMEM_TARGET and tn > _LANE):
        tn = max(_LANE, ((tn // 2) // _LANE) * _LANE)
    while (_vmem_need_bytes(tm, tn, in_size, x_bytes, w_bytes, b_bytes, o_bytes)
           > _VMEM_TARGET and tm > 64):
        tm = max(64, _round_up(tm // 2, _SUBLANE))

    grid_m = _cdiv(m, tm)                 # ragged last M tile masked by Pallas
    grid_n = _cdiv(out_size, tn)          # ragged last N tile masked by Pallas

    # Give both v7x TensorCores work when the grid would collapse to a point.
    if grid_m * grid_n == 1 and m >= 16 * _SUBLANE:
        tm = _round_up(_cdiv(m, 2), _SUBLANE)
        grid_m = _cdiv(m, tm)

    # ---- grid iteration order: make the costlier-to-restream operand resident
    act_total = m * in_size * x_bytes
    w_total = in_size * out_size * w_bytes
    out_total = m * out_size * o_bytes
    weight_resident = (grid_m - 1) * w_total > (grid_n - 1) * act_total
    if weight_resident:
        # n outer / m inner: weight streamed once, activation re-read grid_n x.
        grid = (grid_n, grid_m)
        x_map = lambda j, i: (i, 0)
        w_map = lambda j, i: (0, j)
        b_map = lambda j, i: (0, j)
        o_map = lambda j, i: (i, j)
        bytes_accessed = grid_n * act_total + w_total + out_total
    else:
        # m outer / n inner: activation streamed once, weight re-read grid_m x.
        grid = (grid_m, grid_n)
        x_map = lambda i, j: (i, 0)
        w_map = lambda i, j: (0, j)
        b_map = lambda i, j: (0, j)
        o_map = lambda i, j: (i, j)
        bytes_accessed = act_total + grid_m * w_total + out_total

    need = _vmem_need_bytes(tm, tn, in_size, x_bytes, w_bytes, b_bytes, o_bytes)
    vmem_limit = int(min(_VMEM_LIMIT_CAP, max(32 * _MIB, need + 4 * _MIB)))

    cost = pl.CostEstimate(flops=2 * m * in_size * out_size,
                           transcendentals=0,
                           bytes_accessed=int(bytes_accessed))

    out = pl.pallas_call(
        _linear_relu_kernel,
        out_shape=jax.ShapeDtypeStruct((m, out_size), out_dtype),
        grid_spec=pltpu.PrefetchScalarGridSpec(
            num_scalar_prefetch=0,
            grid=grid,
            in_specs=[
                pl.BlockSpec((tm, in_size), x_map),   # x row tile (full IN)
                pl.BlockSpec((in_size, tn), w_map),   # weight column tile
                pl.BlockSpec((1, tn), b_map),         # bias row (tiny)
            ],
            out_specs=pl.BlockSpec((tm, tn), o_map),
        ),
        compiler_params=pltpu.CompilerParams(
            dimension_semantics=("parallel", "parallel"),
            vmem_limit_bytes=vmem_limit),
        cost_estimate=cost,
    )(x2d, weight_t, bias2d)

    return out.reshape(*lead_shape, out_size)


def init_linear_params(key, input_size, output_size, dtype=jnp.float32):
    """Deterministic nn.Linear-style init: U(-1/sqrt(in), 1/sqrt(in))."""
    kw, kb = jax.random.split(key)
    bound = 1.0 / (input_size ** 0.5)
    # torch stores weight as (OUT, IN); we keep the transposed (IN, OUT) form.
    weight_t = jax.random.uniform(
        kw, (input_size, output_size), dtype, minval=-bound, maxval=bound)
    bias = jax.random.uniform(
        kb, (output_size,), dtype, minval=-bound, maxval=bound)
    return weight_t, bias


if __name__ == "__main__":
    key = jax.random.PRNGKey(0)
    k_in1, k_p1, k_in2, k_p2 = jax.random.split(key, 4)

    # Case 1: encoder-style input (seq_len, batch, IN) at small shapes,
    # forced through the Pallas kernel path.
    seq_len, batch, in_size, out_size = 8, 2, 32, 32
    x1 = jax.random.normal(k_in1, (seq_len, batch, in_size), jnp.float32)
    w1, b1 = init_linear_params(k_p1, in_size, out_size)
    ref1 = jnp.maximum(
        jnp.einsum("nbi,io->nbo", x1, w1,
                   precision=jax.lax.Precision.HIGHEST) + b1, 0.0)

    y1 = feature_extractor_forward(x1, w1, b1, allow_xla_fallback=False)
    jax.block_until_ready(y1)
    assert y1.shape == (seq_len, batch, out_size)
    assert jnp.allclose(y1, ref1, atol=2e-3, rtol=2e-3)

    # Same small case via the XLA small-problem fallback path.
    y1f = feature_extractor_forward(x1, w1, b1)
    jax.block_until_ready(y1f)
    assert jnp.allclose(y1f, ref1, atol=2e-3, rtol=2e-3)

    # Case 2: multi-tile grid in M and N, ragged last tiles in both axes,
    # non-128-multiple OUT (exercises masked edge stores, no padding/slice).
    seq_len2, batch2, in2, out2 = 75, 8, 96, 200
    x2 = jax.random.normal(k_in2, (seq_len2, batch2, in2), jnp.float32)
    w2, b2 = init_linear_params(k_p2, in2, out2)
    ref2 = jnp.maximum(
        jnp.einsum("nbi,io->nbo", x2, w2,
                   precision=jax.lax.Precision.HIGHEST) + b2, 0.0)

    y2 = feature_extractor_forward(x2, w2, b2, max_tm=128, max_tn=128,
                                   allow_xla_fallback=False)
    jax.block_until_ready(y2)
    assert y2.shape == (seq_len2, batch2, out2)
    assert jnp.allclose(y2, ref2, atol=2e-3, rtol=2e-3)

    # Same case with default (large, balanced) tiles / weight-resident order.
    y2b = feature_extractor_forward(x2, w2, b2, allow_xla_fallback=False)
    jax.block_until_ready(y2b)
    assert jnp.allclose(y2b, ref2, atol=2e-3, rtol=2e-3)

    # Case 3: output_size == 0 branch of the torch module (no kernel needed).
    w0, b0 = init_linear_params(k_p1, in_size, 0)
    y0 = feature_extractor_forward(x1, w0, b0)
    assert y0.shape == (0,)

    print("KERNEL_OK")
</pallas_src>

<mosaic_0001>
module attributes {stable_mosaic.version = 11 : i64} {
  func.func @_linear_relu_kernel(%arg0: i32, %arg1: i32, %arg2: memref<16x32xf32, #tpu.memory_space<vmem>>, %arg3: memref<32x32xf32, #tpu.memory_space<vmem>>, %arg4: memref<1x32xf32, #tpu.memory_space<vmem>>, %arg5: memref<16x32xf32, #tpu.memory_space<vmem>>) attributes {dimension_semantics = [#tpu.dimension_semantics<parallel>, #tpu.dimension_semantics<parallel>], iteration_bounds = array<i64: 1, 1>, scalar_prefetch = 0 : i64, scratch_operands = 0 : i64, tpu.core_type = #tpu.core_type<tc>, window_params = [{transform_indices = @transform_0, window_bounds = array<i64: 16, 32>}, {transform_indices = @transform_1, window_bounds = array<i64: 32, 32>}, {transform_indices = @transform_2, window_bounds = array<i64: 1, 32>}, {transform_indices = @transform_3, window_bounds = array<i64: 16, 32>}]} {
    %c0 = arith.constant 0 : index
    %c0_0 = arith.constant 0 : index
    %0 = vector.load %arg2[%c0, %c0_0] : memref<16x32xf32, #tpu.memory_space<vmem>>, vector<16x32xf32>
    %c0_1 = arith.constant 0 : index
    %c0_2 = arith.constant 0 : index
    %1 = vector.load %arg3[%c0_1, %c0_2] : memref<32x32xf32, #tpu.memory_space<vmem>>, vector<32x32xf32>
    %cst = arith.constant dense<0.000000e+00> : vector<16x32xf32>
    %2 = tpu.matmul %0, %1, %cst {dimension_numbers = #tpu.dot_dimension_numbers<[1], [0], [0], [1], [0, 0, 1, 1], [], []>} : vector<16x32xf32>, vector<32x32xf32>, vector<16x32xf32> -> vector<16x32xf32>
    %c0_3 = arith.constant 0 : index
    %c0_4 = arith.constant 0 : index
    %3 = vector.load %arg4[%c0_3, %c0_4] : memref<1x32xf32, #tpu.memory_space<vmem>>, vector<1x32xf32>
    %4 = vector.broadcast %3 : vector<1x32xf32> to vector<16x32xf32>
    %5 = arith.addf %2, %4 : vector<16x32xf32>
    %cst_5 = arith.constant 0.000000e+00 : f32
    %6 = vector.broadcast %cst_5 : f32 to vector<16x32xf32>
    %7 = arith.maximumf %5, %6 : vector<16x32xf32>
    %c0_6 = arith.constant 0 : index
    %c0_7 = arith.constant 0 : index
    %8 = vector.load %arg5[%c0_6, %c0_7] : memref<16x32xf32, #tpu.memory_space<vmem>>, vector<16x32xf32>
    tpu.vector_store %arg5[%c0_6, %c0_7], %7 {strides = array<i32>} : memref<16x32xf32, #tpu.memory_space<vmem>>, vector<16x32xf32>,
    return
  }
  func.func @transform_0(%arg0: i32, %arg1: i32) -> (i32, i32) {
    %c0_i32 = arith.constant 0 : i32
    %c0_i32_0 = arith.constant 0 : i32
    return %arg0, %c0_i32 : i32, i32
  }
  func.func @transform_1(%arg0: i32, %arg1: i32) -> (i32, i32) {
    %c0_i32 = arith.constant 0 : i32
    %c0_i32_0 = arith.constant 0 : i32
    return %c0_i32, %arg1 : i32, i32
  }
  func.func @transform_2(%arg0: i32, %arg1: i32) -> (i32, i32) {
    %c0_i32 = arith.constant 0 : i32
    %c0_i32_0 = arith.constant 0 : i32
    return %c0_i32, %arg1 : i32, i32
  }
  func.func @transform_3(%arg0: i32, %arg1: i32) -> (i32, i32) {
    %c0_i32 = arith.constant 0 : i32
    return %arg0, %arg1 : i32, i32
  }
}

</mosaic_0001>

<llo_original>
// kernel: feature_extractor_forward.1
$region0: #{feature_extractor_forward.1}
  #allocation0 [shape = 'u32[]', space=smem, size = 0x4, offset = 0x4, fixed_abs, tag = 'smem constant byte address 0x4 - core index']
  #allocation1 [shape = 'u32[144,128]{1,0:T(1,128)}', space=vmem, size = 0x12000, scoped, tag = 'internal scratch']
  %s0 = inlined_call_operand.hbm [shape: f32[16,32], index: 0, kind: input, shape index: {}]
  %s1 = inlined_call_operand.hbm [shape: f32[32,32], index: 1, kind: input, shape index: {}]
  %s2 = inlined_call_operand.vmem [shape: f32[1,32], index: 2, kind: input, shape index: {}]
  %s3 = inlined_call_operand.hbm [shape: f32[16,32], index: 3, kind: output, shape index: {}]
  %s4 = sld [smem:[#allocation0]]
  $region30: #{feature_extractor_forward.1} parent=0
    _
  %s6 = ssub.s32 1, %s4
  %s7 = scalar_select 0, %s6, %s4
  $region1: #{feature_extractor_forward.1} parent=0
    #allocation2 [shape = 'u8[8192]{0}', space=vmem, size = 0x2000, scoped, tag = 'input window, operand 0, single buffered']
    #allocation3 [shape = 's32[1]{0}', space=sflag, size = 0x4, scoped, tag = 'scoped memory for feature_extractor_forward.1']
    #allocation4 [shape = 's32[1]{0}', space=sflag, size = 0x4, scoped, tag = 'scoped memory for feature_extractor_forward.1']
    #allocation5 [shape = 'u8[16384]{0}', space=vmem, size = 0x4000, scoped, tag = 'input window, operand 1, single buffered']
    #allocation6 [shape = 's32[1]{0}', space=sflag, size = 0x4, scoped, tag = 'scoped memory for feature_extractor_forward.1']
    #allocation7 [shape = 'u8[8192]{0}', space=vmem, size = 0x2000, scoped, tag = 'output window, operand 0, single buffered']
    %8 = vsyncpa [#allocation3], 0
    %9 = vsyncpa [#allocation6], 0
    %10 = vsyncpa [#allocation4], 0
    // Predicated region
    $region2: #{feature_extractor_forward.1} parent=1 // pred_check
      _
    $region3: #{feature_extractor_forward.1} parent=1 // pred_check_branch
      %12 = sbr.rel (0) target = $region5
    $region4: #{feature_extractor_forward.1} parent=1 // pred_region
      %s14 = ssub.s32 256, 256
      %15 = vsyncadd [#allocation3], %s14
      %s16 = sshll.u32 [#allocation2], 4
      %s17 = int_to_ptr.vmem [resolvable:$true] %s16
      %22 = dma.hbm_to_vmem [thread:$0]  %s0, 256, %s17, [#allocation3], 128, 128, 8
    $region5: #{feature_extractor_forward.1} parent=1 // pred_fallthru
      _
    // Predicated region
    $region6: #{feature_extractor_forward.1} parent=1 // pred_check
      _
    $region7: #{feature_extractor_forward.1} parent=1 // pred_check_branch
      %24 = sbr.rel (0) target = $region9
    $region8: #{feature_extractor_forward.1} parent=1 // pred_region
      %s26 = ssub.s32 512, 512
      %27 = vsyncadd [#allocation6], %s26
      %s28 = sshll.u32 [#allocation5], 4
      %s29 = int_to_ptr.vmem [resolvable:$true] %s28
      %34 = dma.hbm_to_vmem [thread:$0]  %s1, 512, %s29, [#allocation6], 128, 128, 8
    $region9: #{feature_extractor_forward.1} parent=1 // pred_fallthru
      _
    // Predicated region
    $region10: #{feature_extractor_forward.1} parent=1 // pred_check
      _
    $region11: #{feature_extractor_forward.1} parent=1 // pred_check_branch
      %36 = sbr.rel (0) target = $region13
    $region12: #{feature_extractor_forward.1} parent=1 // pred_region
      _
    $region13: #{feature_extractor_forward.1} parent=1 // pred_fallthru
      _
    // Predicated region
    $region14: #{feature_extractor_forward.1} parent=1 // pred_check
      _
    $region15: #{feature_extractor_forward.1} parent=1 // pred_check_branch
      %38 = sbr.rel (0) target = $region17
    $region16: #{feature_extractor_forward.1} parent=1 // pred_region
      %39 = dma.done [#allocation3], 256
    $region17: #{feature_extractor_forward.1} parent=1 // pred_fallthru
      _
    // Predicated region
    $region18: #{feature_extractor_forward.1} parent=1 // pred_check
      _
    $region19: #{feature_extractor_forward.1} parent=1 // pred_check_branch
      %41 = sbr.rel (0) target = $region21
    $region20: #{feature_extractor_forward.1} parent=1 // pred_region
      %42 = dma.done [#allocation6], 512
    $region21: #{feature_extractor_forward.1} parent=1 // pred_fallthru
      _
    %v43 = vld [vmem:[#allocation2] sm:$0xff]
    %v44 = vld [vmem:[#allocation2 + $0x8] sm:$0xff]
    %v45 = vld [vmem:[#allocation5] sm:$0xff]
    %v46 = vld [vmem:[#allocation5 + $0x8] sm:$0xff]
    %v47 = vld [vmem:[#allocation5 + $0x10] sm:$0xff]
    %v48 = vld [vmem:[#allocation5 + $0x18] sm:$0xff]
    %v49 = vld [vmem:[%s2] sm:$0x1]
    %v51 = vlaneseq
    %v52 = vshrl.u32 %v51, 7
    %v53 = vsub.s32 0, %v52
    %v54 = vrot.slane %v49, %v53
    %vm56 = vcmask 261120
    %v58 = vsel %vm56, %v43, 0
    %v61 = vsel %vm56, %v44, 0
    %63 = vmatprep.subr.mxu0 0.0
    %64 = vmatpush1.msra.mxu0 %v45
    %65 = vmatprep.subr.mxu0 0.0
    %66 = vmatpush1.msra.mxu0 %v46
    %67 = vmatprep.subr.mxu0 0.0
    %68 = vmatpush1.msra.mxu0 %v47
    %69 = vmatprep.subr.mxu0 0.0
    %70 = vmatpush1.msra.mxu0 %v48
    %71 = vmatprep.subr.mxu0 0.0
    %72 = vmatpush1.msra.mxu0 0.0
    %73 = vmatprep.subr.mxu0 0.0
    %74 = vmatpush1.msra.mxu0 0.0
    %75 = vmatprep.subr.mxu0 0.0
    %76 = vmatpush1.msra.mxu0 0.0
    %77 = vmatprep.subr.mxu0 0.0
    %78 = vmatpush1.msra.mxu0 0.0
    %79 = vmatprep.subr.mxu0 0.0
    %80 = vmatpush1.msra.mxu0 0.0
    %81 = vmatprep.subr.mxu0 0.0
    %82 = vmatpush1.msra.mxu0 0.0
    %83 = vmatprep.subr.mxu0 0.0
    %84 = vmatpush1.msra.mxu0 0.0
    %85 = vmatprep.subr.mxu0 0.0
    %86 = vmatpush1.msra.mxu0 0.0
    %87 = vmatprep.subr.mxu0 0.0
    %88 = vmatpush1.msra.mxu0 0.0
    %89 = vmatprep.subr.mxu0 0.0
    %90 = vmatpush1.msra.mxu0 0.0
    %91 = vmatprep.subr.mxu0 0.0
    %92 = vmatpush1.msra.mxu0 0.0
    %93 = vmatprep.subr.mxu0 0.0
    %94 = vmatpush1.msra.mxu0 0.0
    %95 = vmatprep.subr.mxu0 0.0
    %96 = vmatpush1.msra.mxu0 0.0
    %97 = vmatprep.subr.mxu0 0.0
    %98 = vmatpush1.msra.mxu0 0.0
    %99 = vmatprep.subr.mxu0 0.0
    %100 = vmatpush1.msra.mxu0 0.0
    %101 = vmatprep.subr.mxu0 0.0
    %102 = vmatpush1.msra.mxu0 0.0
    %103 = vmatprep.subr.mxu0 0.0
    %104 = vmatpush1.msra.mxu0 0.0
    %105 = vmatprep.subr.mxu0 0.0
    %106 = vmatpush1.msra.mxu0 0.0
    %107 = vmatprep.subr.mxu0 0.0
    %108 = vmatpush1.msra.mxu0 0.0
    %109 = vmatprep.subr.mxu0 0.0
    %110 = vmatpush1.msra.mxu0 0.0
    %111 = vmatprep.subr.mxu0 0.0
    %112 = vmatpush1.msra.mxu0 0.0
    %113 = vmatprep.subr.mxu0 0.0
    %114 = vmatpush1.msra.mxu0 0.0
    %115 = vmatprep.subr.mxu0 0.0
    %116 = vmatpush1.msra.mxu0 0.0
    %117 = vmatprep.subr.mxu0 0.0
    %118 = vmatpush1.msra.mxu0 0.0
    %119 = vmatprep.subr.mxu0 0.0
    %120 = vmatpush1.msra.mxu0 0.0
    %121 = vmatprep.subr.mxu0 0.0
    %122 = vmatpush1.msra.mxu0 0.0
    %123 = vmatprep.subr.mxu0 0.0
    %124 = vmatpush1.msra.mxu0 0.0
    %125 = vmatprep.subr.mxu0 0.0
    %126 = vmatpush1.msra.mxu0 0.0
    %127 = vmatprep.mubr.f32.mxu0 0.0
    %128 = vmatmul.mubr.f32.gmra.mrb[0].mxu0 %v58
    %v129 = vpop.f32.mrb[0].mxu0
    %v130 = vadd.f32 %v54, %v129
    %v131 = vpop.f32.mrb[0].mxu0
    %132 = vmatprep.mubr.f32.mxu0 0.0
    %133 = vmatmul.mubr.f32.gmra.mrb[0].mxu0 %v61
    %v134 = vpop.f32.mrb[0].mxu0
    %v135 = vadd.f32 %v54, %v134
    %v136 = vpop.f32.mrb[0].mxu0
    %137 = vdwg.mxu0
    %v138 = vmax.f32 %v130, 0.0
    %v139 = vmax.f32 %v135, 0.0
    %140 = vst.msk [vmem:[#allocation7] sm:$0xff] %vm56, %v138
    %141 = vst.msk [vmem:[#allocation7 + $0x8] sm:$0xff] %vm56, %v139
    // Predicated region
    $region22: #{feature_extractor_forward.1} parent=1 // pred_check
      _
    $region23: #{feature_extractor_forward.1} parent=1 // pred_check_branch
      %143 = sbr.rel (0) target = $region25
    $region24: #{feature_extractor_forward.1} parent=1 // pred_region
      %s145 = ssub.s32 256, 256
      %146 = vsyncadd [#allocation4], %s145
      %s147 = sshll.u32 [#allocation7], 4
      %s148 = int_to_ptr.vmem [resolvable:$true] %s147
      %153 = dma.vmem_to_hbm [thread:$0]  %s148, 256, %s3, [#allocation4], 128, 128, 8
    $region25: #{feature_extractor_forward.1} parent=1 // pred_fallthru
      _
    // Predicated region
    $region26: #{feature_extractor_forward.1} parent=1 // pred_check
      _
    $region27: #{feature_extractor_forward.1} parent=1 // pred_check_branch
      %155 = sbr.rel (0) target = $region29
    $region28: #{feature_extractor_forward.1} parent=1 // pred_region
      %156 = dma.done [#allocation4], 256
    $region29: #{feature_extractor_forward.1} parent=1 // pred_fallthru
      _
    %157 = vsyncpa [#allocation3], 1
    %158 = vsyncpa [#allocation6], 1
    %159 = vsyncpa [#allocation4], 1

</llo_original>
